<compile_context>
chip_gen: v5e
topology: v5e:2x2
jax: 0.10.0
libtpu: 0.0.40
codegen_flags: <defaults>
</compile_context>

<pallas_src>
import math
from functools import partial

import jax
import jax.numpy as jnp
from jax.experimental import pallas as pl
from jax.experimental.pallas import tpu as pltpu


def _round_up(n, m):
    return ((n + m - 1) // m) * m


def _policy_kernel(x_ref, w1_ref, b1_ref, w2_ref, b2_ref, w3t_ref, b3t_ref,
                   mean_t_ref):
    """One batch tile of the 3-layer MLP. Everything stays in vregs/VMEM."""
    w_dtype = w1_ref.dtype            # f32 by default, bf16 if requested
    x = x_ref[...]

    # fc1 + ReLU  (MXU matmul, f32 accumulation; bias/ReLU on the VPU in f32)
    h1 = jnp.dot(x.astype(w_dtype), w1_ref[...],
                 preferred_element_type=jnp.float32)
    h1 = jnp.maximum(h1 + b1_ref[...], 0.0)

    # fc2 + ReLU
    h2 = jnp.dot(h1.astype(w_dtype), w2_ref[...],
                 preferred_element_type=jnp.float32)
    h2 = jnp.maximum(h2 + b2_ref[...], 0.0)

    # fc_mean, action-major: (ap8, hp) x (tb, hp)^T -> (ap8, tb).
    # Batch sits on the lane axis, so the store is an unmasked lane-dense vst
    # of only 8 sublanes -> ~16x less HBM writeback than a 128-lane-padded
    # (tb, 128) output.
    mt = jax.lax.dot_general(
        w3t_ref[...], h2.astype(w_dtype),
        dimension_numbers=(((1,), (1,)), ((), ())),
        preferred_element_type=jnp.float32)
    mean_t_ref[...] = (mt + b3t_ref[...]).astype(mean_t_ref.dtype)


def _batch_tiling(batch, block_batch):
    """Pick (tile_batch, padded_batch).

    * batch <= 256: one full-extent tile (rounded to a sublane multiple) —
      latency path, no pipeline overhead.
    * batch  > 256: tiles are a multiple of 128 (keeps the action-major output
      block lane-dense) and the grid always has >= 2 steps so the "parallel"
      batch axis can shard across both TensorCores on v7x.
    """
    if batch <= 256:
        tb = _round_up(batch, 8)
        return tb, tb
    block_batch = max(128, _round_up(block_batch, 128))
    tb = min(block_batch, _round_up(pl.cdiv(batch, 2), 128))
    return tb, _round_up(batch, tb)


@partial(jax.jit, static_argnames=("block_batch",))
def policy_network_forward(x, params, *, block_batch=1024):
    """Runs the PolicyNetwork forward pass. Returns (mean, log_std).

    x: (batch, state_dim) f32.  params: padded params from init_params.
    Jitted end-to-end: the batch pad, the Pallas kernel and the final
    slice/transpose compile into a single executable.
    """
    w1, b1, w2, b2, w3t, b3t, log_std = params
    batch, state_dim = x.shape
    hp = w1.shape[1]                 # padded hidden width (multiple of 128)
    ap8 = w3t.shape[0]               # action rows padded to a sublane multiple
    action_dim = log_std.shape[0]

    tb, padded_batch = _batch_tiling(batch, block_batch)
    if padded_batch != batch:
        x = jnp.pad(x, ((0, padded_batch - batch), (0, 0)))

    grid = (padded_batch // tb,)

    mean_t = pl.pallas_call(
        _policy_kernel,
        out_shape=jax.ShapeDtypeStruct((ap8, padded_batch), jnp.float32),
        grid=grid,
        in_specs=[
            # x: tiled over batch, double-buffered by the Pallas pipeline.
            pl.BlockSpec((tb, state_dim), lambda i: (i, 0)),
            # Weights / biases: full arrays with constant index maps ->
            # fetched once, VMEM-resident across every grid step.
            pl.BlockSpec((state_dim, hp), lambda i: (0, 0)),
            pl.BlockSpec((1, hp), lambda i: (0, 0)),
            pl.BlockSpec((hp, hp), lambda i: (0, 0)),
            pl.BlockSpec((1, hp), lambda i: (0, 0)),
            pl.BlockSpec((ap8, hp), lambda i: (0, 0)),
            pl.BlockSpec((ap8, 1), lambda i: (0, 0)),
        ],
        out_specs=pl.BlockSpec((ap8, tb), lambda i: (0, i)),
        compiler_params=pltpu.CompilerParams(
            # Batch tiles are independent -> shard across TCs on v7x megacore.
            dimension_semantics=("parallel",),
        ),
    )(x, w1, b1, w2, b2, w3t, b3t)

    # Drop sublane/batch padding and return to (batch, action_dim); this tiny
    # slice+transpose fuses into the same jit as the kernel.
    mean = mean_t[:action_dim, :batch].T
    # log_std is a learnable parameter returned as-is (no compute in forward).
    return mean, log_std


def init_params(key, state_dim, hidden_dim, action_dim, *,
                weight_dtype=jnp.float32):
    """PyTorch-Linear-like uniform init, padded for lane/sublane-dense tiles.

    hidden_dim is zero-padded to a multiple of 128 (lane axis of the two big
    matmuls).  fc_mean is stored transposed, (action_pad8, hidden_pad), with
    action_dim padded only to a multiple of 8 sublanes, so the kernel's output
    tile is action-major and HBM writeback is minimal.  Zero padding is
    mathematically inert (padded hidden units are relu(0)=0 feeding zero rows;
    padded action rows are sliced off by the wrapper).

    weight_dtype=jnp.bfloat16 halves resident weight bytes on v6e/v7x but the
    inter-layer activation casts make results diverge from the f32 reference
    beyond ~1e-5; at hidden_dim~128 the kernel is not MXU-bound, so keep f32
    unless hidden_dim grows into the 1-2K range (and validate with a matching
    bf16 reference / looser tolerance).
    """
    ks = jax.random.split(key, 6)
    hp = _round_up(hidden_dim, 128)
    ap8 = _round_up(action_dim, 8)

    def uniform(k, shape, fan_in):
        bound = 1.0 / math.sqrt(fan_in)
        return jax.random.uniform(k, shape, jnp.float32, -bound, bound)

    w1 = uniform(ks[0], (state_dim, hidden_dim), state_dim)
    b1 = uniform(ks[1], (1, hidden_dim), state_dim)
    w2 = uniform(ks[2], (hidden_dim, hidden_dim), hidden_dim)
    b2 = uniform(ks[3], (1, hidden_dim), hidden_dim)
    w3 = uniform(ks[4], (hidden_dim, action_dim), hidden_dim)
    b3 = uniform(ks[5], (1, action_dim), hidden_dim)

    w1p = jnp.pad(w1, ((0, 0), (0, hp - hidden_dim))).astype(weight_dtype)
    b1p = jnp.pad(b1, ((0, 0), (0, hp - hidden_dim)))          # biases stay f32
    w2p = jnp.pad(w2, ((0, hp - hidden_dim), (0, hp - hidden_dim))).astype(weight_dtype)
    b2p = jnp.pad(b2, ((0, 0), (0, hp - hidden_dim)))
    # fc_mean stored transposed (action-major): (ap8, hp), bias (ap8, 1).
    w3t = jnp.pad(w3.T, ((0, ap8 - action_dim), (0, hp - hidden_dim))).astype(weight_dtype)
    b3t = jnp.pad(b3.T, ((0, ap8 - action_dim), (0, 0)))
    log_std = jnp.zeros((action_dim,), jnp.float32)   # nn.Parameter(torch.zeros)
    return (w1p, b1p, w2p, b2p, w3t, b3t, log_std)


def reference_forward(x, params):
    """Pure-JAX reference (same padded params; padding is zero so math is
    identical to the unpadded network)."""
    w1, b1, w2, b2, w3t, b3t, log_std = params
    action_dim = log_std.shape[0]
    h1 = jnp.maximum(x @ w1.astype(jnp.float32) + b1, 0.0)
    h2 = jnp.maximum(h1 @ w2.astype(jnp.float32) + b2, 0.0)
    mean = (h2 @ w3t.astype(jnp.float32).T + b3t.T)[:, :action_dim]
    return mean, log_std


if __name__ == "__main__":
    state_dim, hidden_dim, action_dim = 8, 32, 4
    batch = 2

    key = jax.random.PRNGKey(0)
    k_x, k_p, k_big = jax.random.split(key, 3)
    x = jax.random.normal(k_x, (batch, state_dim), jnp.float32)
    params = init_params(k_p, state_dim, hidden_dim, action_dim)

    # Small (toy) batch — single full-extent tile, latency path.
    mean, log_std = policy_network_forward(x, params)
    jax.block_until_ready(mean)
    jax.block_until_ready(log_std)

    ref_mean, ref_log_std = reference_forward(x, params)
    assert mean.shape == (batch, action_dim)
    assert log_std.shape == (action_dim,)
    assert jnp.allclose(mean, ref_mean, atol=1e-4, rtol=1e-4), (
        float(jnp.max(jnp.abs(mean - ref_mean))))
    assert jnp.allclose(log_std, ref_log_std)

    # Larger rollout-style batch — multi-step batch grid (always >= 2 tiles,
    # so the "parallel" batch axis feeds both TensorCores on v7x).
    big_batch = 300
    x_big = jax.random.normal(k_big, (big_batch, state_dim), jnp.float32)
    mean_big, _ = policy_network_forward(x_big, params, block_batch=128)
    jax.block_until_ready(mean_big)
    ref_big, _ = reference_forward(x_big, params)
    assert mean_big.shape == (big_batch, action_dim)
    assert jnp.allclose(mean_big, ref_big, atol=1e-4, rtol=1e-4)

    print("KERNEL_OK")
</pallas_src>

<mosaic_0001>
module attributes {stable_mosaic.version = 11 : i64} {
  func.func @_policy_kernel(%arg0: i32, %arg1: memref<8x8xf32, #tpu.memory_space<vmem>>, %arg2: memref<8x128xf32, #tpu.memory_space<vmem>>, %arg3: memref<1x128xf32, #tpu.memory_space<vmem>>, %arg4: memref<128x128xf32, #tpu.memory_space<vmem>>, %arg5: memref<1x128xf32, #tpu.memory_space<vmem>>, %arg6: memref<8x128xf32, #tpu.memory_space<vmem>>, %arg7: memref<8x1xf32, #tpu.memory_space<vmem>>, %arg8: memref<8x8xf32, #tpu.memory_space<vmem>>) attributes {dimension_semantics = [#tpu.dimension_semantics<parallel>], iteration_bounds = array<i64: 1>, scalar_prefetch = 0 : i64, scratch_operands = 0 : i64, tpu.core_type = #tpu.core_type<tc>, window_params = [{transform_indices = @transform_0, window_bounds = array<i64: 8, 8>}, {pipeline_mode = #tpu.pipeline_mode<synchronous>, transform_indices = @transform_1, window_bounds = array<i64: 8, 128>}, {pipeline_mode = #tpu.pipeline_mode<synchronous>, transform_indices = @transform_2, window_bounds = array<i64: 1, 128>}, {pipeline_mode = #tpu.pipeline_mode<synchronous>, transform_indices = @transform_3, window_bounds = array<i64: 128, 128>}, {pipeline_mode = #tpu.pipeline_mode<synchronous>, transform_indices = @transform_4, window_bounds = array<i64: 1, 128>}, {pipeline_mode = #tpu.pipeline_mode<synchronous>, transform_indices = @transform_5, window_bounds = array<i64: 8, 128>}, {pipeline_mode = #tpu.pipeline_mode<synchronous>, transform_indices = @transform_6, window_bounds = array<i64: 8, 1>}, {transform_indices = @transform_7, window_bounds = array<i64: 8, 8>}]} {
    %c0 = arith.constant 0 : index
    %c0_0 = arith.constant 0 : index
    %0 = vector.load %arg1[%c0, %c0_0] : memref<8x8xf32, #tpu.memory_space<vmem>>, vector<8x8xf32>
    %c0_1 = arith.constant 0 : index
    %c0_2 = arith.constant 0 : index
    %1 = vector.load %arg2[%c0_1, %c0_2] : memref<8x128xf32, #tpu.memory_space<vmem>>, vector<8x128xf32>
    %cst = arith.constant dense<0.000000e+00> : vector<8x128xf32>
    %2 = tpu.matmul %0, %1, %cst {dimension_numbers = #tpu.dot_dimension_numbers<[1], [0], [0], [1], [0, 0, 1, 1], [], []>} : vector<8x8xf32>, vector<8x128xf32>, vector<8x128xf32> -> vector<8x128xf32>
    %c0_3 = arith.constant 0 : index
    %c0_4 = arith.constant 0 : index
    %3 = vector.load %arg3[%c0_3, %c0_4] : memref<1x128xf32, #tpu.memory_space<vmem>>, vector<1x128xf32>
    %4 = vector.broadcast %3 : vector<1x128xf32> to vector<8x128xf32>
    %5 = arith.addf %2, %4 : vector<8x128xf32>
    %cst_5 = arith.constant 0.000000e+00 : f32
    %6 = vector.broadcast %cst_5 : f32 to vector<8x128xf32>
    %7 = arith.maximumf %5, %6 : vector<8x128xf32>
    %c0_6 = arith.constant 0 : index
    %c0_7 = arith.constant 0 : index
    %8 = vector.load %arg4[%c0_6, %c0_7] : memref<128x128xf32, #tpu.memory_space<vmem>>, vector<128x128xf32>
    %cst_8 = arith.constant dense<0.000000e+00> : vector<8x128xf32>
    %9 = tpu.matmul %7, %8, %cst_8 {dimension_numbers = #tpu.dot_dimension_numbers<[1], [0], [0], [1], [0, 0, 1, 1], [], []>} : vector<8x128xf32>, vector<128x128xf32>, vector<8x128xf32> -> vector<8x128xf32>
    %c0_9 = arith.constant 0 : index
    %c0_10 = arith.constant 0 : index
    %10 = vector.load %arg5[%c0_9, %c0_10] : memref<1x128xf32, #tpu.memory_space<vmem>>, vector<1x128xf32>
    %11 = vector.broadcast %10 : vector<1x128xf32> to vector<8x128xf32>
    %12 = arith.addf %9, %11 : vector<8x128xf32>
    %cst_11 = arith.constant 0.000000e+00 : f32
    %13 = vector.broadcast %cst_11 : f32 to vector<8x128xf32>
    %14 = arith.maximumf %12, %13 : vector<8x128xf32>
    %c0_12 = arith.constant 0 : index
    %c0_13 = arith.constant 0 : index
    %15 = vector.load %arg6[%c0_12, %c0_13] : memref<8x128xf32, #tpu.memory_space<vmem>>, vector<8x128xf32>
    %cst_14 = arith.constant dense<0.000000e+00> : vector<8x8xf32>
    %16 = tpu.matmul %15, %14, %cst_14 {dimension_numbers = #tpu.dot_dimension_numbers<[1], [1], [0], [0], [0, 0, 1, 0], [], []>} : vector<8x128xf32>, vector<8x128xf32>, vector<8x8xf32> -> vector<8x8xf32>
    %c0_15 = arith.constant 0 : index
    %c0_16 = arith.constant 0 : index
    %17 = vector.load %arg7[%c0_15, %c0_16] : memref<8x1xf32, #tpu.memory_space<vmem>>, vector<8x1xf32>
    %18 = vector.broadcast %17 : vector<8x1xf32> to vector<8x8xf32>
    %19 = arith.addf %16, %18 : vector<8x8xf32>
    %c0_17 = arith.constant 0 : index
    %c0_18 = arith.constant 0 : index
    %20 = vector.load %arg8[%c0_17, %c0_18] : memref<8x8xf32, #tpu.memory_space<vmem>>, vector<8x8xf32>
    tpu.vector_store %arg8[%c0_17, %c0_18], %19 {strides = array<i32>} : memref<8x8xf32, #tpu.memory_space<vmem>>, vector<8x8xf32>,
    return
  }
  func.func @transform_0(%arg0: i32) -> (i32, i32) {
    %c0_i32 = arith.constant 0 : i32
    %c0_i32_0 = arith.constant 0 : i32
    return %arg0, %c0_i32 : i32, i32
  }
  func.func @transform_1(%arg0: i32) -> (i32, i32) {
    %c0_i32 = arith.constant 0 : i32
    %c0_i32_0 = arith.constant 0 : i32
    %c0_i32_1 = arith.constant 0 : i32
    return %c0_i32, %c0_i32_0 : i32, i32
  }
  func.func @transform_2(%arg0: i32) -> (i32, i32) {
    %c0_i32 = arith.constant 0 : i32
    %c0_i32_0 = arith.constant 0 : i32
    %c0_i32_1 = arith.constant 0 : i32
    return %c0_i32, %c0_i32_0 : i32, i32
  }
  func.func @transform_3(%arg0: i32) -> (i32, i32) {
    %c0_i32 = arith.constant 0 : i32
    %c0_i32_0 = arith.constant 0 : i32
    %c0_i32_1 = arith.constant 0 : i32
    return %c0_i32, %c0_i32_0 : i32, i32
  }
  func.func @transform_4(%arg0: i32) -> (i32, i32) {
    %c0_i32 = arith.constant 0 : i32
    %c0_i32_0 = arith.constant 0 : i32
    %c0_i32_1 = arith.constant 0 : i32
    return %c0_i32, %c0_i32_0 : i32, i32
  }
  func.func @transform_5(%arg0: i32) -> (i32, i32) {
    %c0_i32 = arith.constant 0 : i32
    %c0_i32_0 = arith.constant 0 : i32
    %c0_i32_1 = arith.constant 0 : i32
    return %c0_i32, %c0_i32_0 : i32, i32
  }
  func.func @transform_6(%arg0: i32) -> (i32, i32) {
    %c0_i32 = arith.constant 0 : i32
    %c0_i32_0 = arith.constant 0 : i32
    %c0_i32_1 = arith.constant 0 : i32
    return %c0_i32, %c0_i32_0 : i32, i32
  }
  func.func @transform_7(%arg0: i32) -> (i32, i32) {
    %c0_i32 = arith.constant 0 : i32
    %c0_i32_0 = arith.constant 0 : i32
    return %c0_i32, %arg0 : i32, i32
  }
}

</mosaic_0001>

<llo_original>
// kernel: policy_network_forward.1
$region0: #{policy_network_forward.1}
  #allocation0 [shape = 'u32[]', space=smem, size = 0x4, offset = 0x4, fixed_abs, tag = 'smem constant byte address 0x4 - core index']
  #allocation1 [shape = 'u32[72,128]{1,0:T(1,128)}', space=vmem, size = 0x9000, scoped, tag = 'internal scratch']
  %s0 = inlined_call_operand.vmem [shape: f32[8,8], index: 0, kind: input, shape index: {}]
  %s1 = inlined_call_operand.vmem [shape: f32[8,128], index: 1, kind: input, shape index: {}]
  %s2 = inlined_call_operand.vmem [shape: f32[1,128], index: 2, kind: input, shape index: {}]
  %s3 = inlined_call_operand.hbm [shape: f32[128,128], index: 3, kind: input, shape index: {}]
  %s4 = inlined_call_operand.vmem [shape: f32[1,128], index: 4, kind: input, shape index: {}]
  %s5 = inlined_call_operand.vmem [shape: f32[8,128], index: 5, kind: input, shape index: {}]
  %s6 = inlined_call_operand.vmem [shape: f32[8,1], index: 6, kind: input, shape index: {}]
  %s7 = inlined_call_operand.vmem [shape: f32[8,8], index: 7, kind: output, shape index: {}]
  %s8 = sld [smem:[#allocation0]]
  $region42: #{policy_network_forward.1} parent=0
    _
  %s10 = ssub.s32 1, %s8
  %s11 = scalar_select 0, %s10, %s8
  $region1: #{policy_network_forward.1} parent=0
    #allocation2 [shape = 'u8[65536]{0}', space=vmem, size = 0x10000, scoped, tag = 'input window, operand 3, single buffered']
    #allocation3 [shape = 's32[1]{0}', space=sflag, size = 0x4, scoped, tag = 'scoped memory for policy_network_forward.1']
    %12 = vsyncpa [#allocation3], 0
    // Predicated region
    $region2: #{policy_network_forward.1} parent=1 // pred_check
      _
    $region3: #{policy_network_forward.1} parent=1 // pred_check_branch
      %14 = sbr.rel (0) target = $region5
    $region4: #{policy_network_forward.1} parent=1 // pred_region
      _
    $region5: #{policy_network_forward.1} parent=1 // pred_fallthru
      _
    // Predicated region
    $region6: #{policy_network_forward.1} parent=1 // pred_check
      _
    $region7: #{policy_network_forward.1} parent=1 // pred_check_branch
      %16 = sbr.rel (0) target = $region9
    $region8: #{policy_network_forward.1} parent=1 // pred_region
      _
    $region9: #{policy_network_forward.1} parent=1 // pred_fallthru
      _
    // Predicated region
    $region10: #{policy_network_forward.1} parent=1 // pred_check
      _
    $region11: #{policy_network_forward.1} parent=1 // pred_check_branch
      %18 = sbr.rel (0) target = $region13
    $region12: #{policy_network_forward.1} parent=1 // pred_region
      _
    $region13: #{policy_network_forward.1} parent=1 // pred_fallthru
      _
    // Predicated region
    $region14: #{policy_network_forward.1} parent=1 // pred_check
      _
    $region15: #{policy_network_forward.1} parent=1 // pred_check_branch
      %20 = sbr.rel (0) target = $region17
    $region16: #{policy_network_forward.1} parent=1 // pred_region
      %22 = vsyncadd [#allocation3], 0
      %s23 = sshll.u32 %s3, 4
      %s24 = int_to_ptr.hbm [resolvable:$true] %s23
      %s25 = sshll.u32 [#allocation2], 4
      %s26 = int_to_ptr.vmem [resolvable:$true] %s25
      %31 = dma.hbm_to_vmem [thread:$0]  %s24, 2048, %s26, [#allocation3], 128, 128, 8
    $region17: #{policy_network_forward.1} parent=1 // pred_fallthru
      _
    // Predicated region
    $region18: #{policy_network_forward.1} parent=1 // pred_check
      _
    $region19: #{policy_network_forward.1} parent=1 // pred_check_branch
      %33 = sbr.rel (0) target = $region21
    $region20: #{policy_network_forward.1} parent=1 // pred_region
      _
    $region21: #{policy_network_forward.1} parent=1 // pred_fallthru
      _
    // Predicated region
    $region22: #{policy_network_forward.1} parent=1 // pred_check
      _
    $region23: #{policy_network_forward.1} parent=1 // pred_check_branch
      %35 = sbr.rel (0) target = $region25
    $region24: #{policy_network_forward.1} parent=1 // pred_region
      _
    $region25: #{policy_network_forward.1} parent=1 // pred_fallthru
      _
    // Predicated region
    $region26: #{policy_network_forward.1} parent=1 // pred_check
      _
    $region27: #{policy_network_forward.1} parent=1 // pred_check_branch
      %37 = sbr.rel (0) target = $region29
    $region28: #{policy_network_forward.1} parent=1 // pred_region
      _
    $region29: #{policy_network_forward.1} parent=1 // pred_fallthru
      _
    // Predicated region
    $region30: #{policy_network_forward.1} parent=1 // pred_check
      _
    $region31: #{policy_network_forward.1} parent=1 // pred_check_branch
      %39 = sbr.rel (0) target = $region33
    $region32: #{policy_network_forward.1} parent=1 // pred_region
      %41 = dma.done [#allocation3], 2048
    $region33: #{policy_network_forward.1} parent=1 // pred_fallthru
      _
    %v42 = vld [vmem:[%s0] sm:$0xff]
    %v43 = vld [vmem:[%s1] sm:$0xff]
    %v44 = vld [vmem:[%s2] sm:$0x1]
    %v46 = vperm.slane %v44, 0
    %vm48 = vcmask 64512
    %v50 = vsel %vm48, %v42, 0
    %52 = vmatpush.msra.mxu0 0.0
    %53 = vmatpush.msra.mxu0 0.0
    %54 = vmatpush.msra.mxu0 0.0
    %55 = vmatpush.msra.mxu0 0.0
    %56 = vmatpush.msra.mxu0 0.0
    %57 = vmatpush.msra.mxu0 0.0
    %58 = vmatpush.msra.mxu0 0.0
    %59 = vmatpush.msra.mxu0 0.0
    %60 = vmatpush.msra.mxu0 0.0
    %61 = vmatpush.msra.mxu0 0.0
    %62 = vmatpush.msra.mxu0 0.0
    %63 = vmatpush.msra.mxu0 0.0
    %64 = vmatpush.msra.mxu0 0.0
    %65 = vmatpush.msra.mxu0 0.0
    %66 = vmatpush.msra.mxu0 0.0
    %67 = vmatpush.msra.mxu0 %v43
    %68 = vmatmul.f32.gmra.mxu0 %v50
    %v69 = vpop.f32.mrf.mxu0
    %v70 = vadd.f32 %v46, %v69
    %71 = vdwg.mxu0
    %v72 = vmax.f32 %v70, 0.0
    %v73 = vld [vmem:[#allocation2] sm:$0xff]
    %v74 = vld [vmem:[#allocation2 + $0x8] sm:$0xff]
    %v75 = vld [vmem:[#allocation2 + $0x10] sm:$0xff]
    %v76 = vld [vmem:[#allocation2 + $0x18] sm:$0xff]
    %v77 = vld [vmem:[#allocation2 + $0x20] sm:$0xff]
    %v78 = vld [vmem:[#allocation2 + $0x28] sm:$0xff]
    %v79 = vld [vmem:[#allocation2 + $0x30] sm:$0xff]
    %v80 = vld [vmem:[#allocation2 + $0x38] sm:$0xff]
    %v81 = vld [vmem:[#allocation2 + $0x40] sm:$0xff]
    %v82 = vld [vmem:[#allocation2 + $0x48] sm:$0xff]
    %v83 = vld [vmem:[#allocation2 + $0x50] sm:$0xff]
    %v84 = vld [vmem:[#allocation2 + $0x58] sm:$0xff]
    %v85 = vld [vmem:[#allocation2 + $0x60] sm:$0xff]
    %v86 = vld [vmem:[#allocation2 + $0x68] sm:$0xff]
    %v87 = vld [vmem:[#allocation2 + $0x70] sm:$0xff]
    %v88 = vld [vmem:[#allocation2 + $0x78] sm:$0xff]
    %v89 = vld [vmem:[%s4] sm:$0x1]
    %v91 = vperm.slane %v89, 0
    %93 = vmatpush.msra.mxu0 %v88
    %94 = vmatpush.msra.mxu0 %v87
    %95 = vmatpush.msra.mxu0 %v86
    %96 = vmatpush.msra.mxu0 %v85
    %97 = vmatpush.msra.mxu0 %v84
    %98 = vmatpush.msra.mxu0 %v83
    %99 = vmatpush.msra.mxu0 %v82
    %100 = vmatpush.msra.mxu0 %v81
    %101 = vmatpush.msra.mxu0 %v80
    %102 = vmatpush.msra.mxu0 %v79
    %103 = vmatpush.msra.mxu0 %v78
    %104 = vmatpush.msra.mxu0 %v77
    %105 = vmatpush.msra.mxu0 %v76
    %106 = vmatpush.msra.mxu0 %v75
    %107 = vmatpush.msra.mxu0 %v74
    %108 = vmatpush.msra.mxu0 %v73
    %109 = vmatmul.f32.gmra.mxu0 %v72
    %v110 = vpop.f32.mrf.mxu0
    %v111 = vadd.f32 %v91, %v110
    %112 = vdwg.mxu0
    %v113 = vmax.f32 %v111, 0.0
    %v114 = vld [vmem:[%s5] sm:$0xff]
    %v115 = vld [vmem:[%s6] sm:$0xff]
    %117 = vset.pattern.permute.xlu0 0
    %118 = vperm.xlu0 %117, %v115
    %v119 = vpop.permute.xlu0 %118
    %121 = vmatpush.xpose.msra.mxu0 0.0
    %122 = vmatpush.xpose.msra.mxu0 0.0
    %123 = vmatpush.xpose.msra.mxu0 0.0
    %124 = vmatpush.xpose.msra.mxu0 0.0
    %125 = vmatpush.xpose.msra.mxu0 0.0
    %126 = vmatpush.xpose.msra.mxu0 0.0
    %127 = vmatpush.xpose.msra.mxu0 0.0
    %128 = vmatpush.xpose.msra.mxu0 0.0
    %129 = vmatpush.xpose.msra.mxu0 0.0
    %130 = vmatpush.xpose.msra.mxu0 0.0
    %131 = vmatpush.xpose.msra.mxu0 0.0
    %132 = vmatpush.xpose.msra.mxu0 0.0
    %133 = vmatpush.xpose.msra.mxu0 0.0
    %134 = vmatpush.xpose.msra.mxu0 0.0
    %135 = vmatpush.xpose.msra.mxu0 0.0
    %136 = vmatpush.xpose.msra.mxu0 %v113
    %137 = vmatmul.f32.gmra.mxu0 %v114
    %v138 = vpop.f32.mrf.mxu0
    %v139 = vadd.f32 %v119, %v138
    %140 = vdwg.mxu0
    %141 = vst.msk [vmem:[%s7] sm:$0xff] %vm48, %v139
    // Predicated region
    $region34: #{policy_network_forward.1} parent=1 // pred_check
      _
    $region35: #{policy_network_forward.1} parent=1 // pred_check_branch
      %143 = sbr.rel (0) target = $region37
    $region36: #{policy_network_forward.1} parent=1 // pred_region
      _
    $region37: #{policy_network_forward.1} parent=1 // pred_fallthru
      _
    // Predicated region
    $region38: #{policy_network_forward.1} parent=1 // pred_check
      _
    $region39: #{policy_network_forward.1} parent=1 // pred_check_branch
      %145 = sbr.rel (0) target = $region41
    $region40: #{policy_network_forward.1} parent=1 // pred_region
      _
    $region41: #{policy_network_forward.1} parent=1 // pred_fallthru
      _
    %146 = vsyncpa [#allocation3], 1

</llo_original>
